<compile_context>
chip_gen: v5e
topology: v5e:2x2
jax: 0.10.0
libtpu: 0.0.40
codegen_flags: <defaults>
</compile_context>

<pallas_src>
import jax
import jax.numpy as jnp
from jax.experimental import pallas as pl
from jax.experimental.pallas import tpu as pltpu


def _spatial_matmul_kernel(x_ref, w_ref, o_ref):
    # x_ref: (bm, K), w_ref: (K, N), o_ref: (bm, N) with K = pack*I*X and
    # N = pack*X*O.  One dense MXU matmul; the block-diagonal structure of
    # w_ref realises the per-mode contraction sum_i x[t,b,i,m] * W[m,i,o].
    o_ref[...] = jnp.dot(
        x_ref[...], w_ref[...], preferred_element_type=jnp.float32
    ).astype(o_ref.dtype)


def _choose_pack(n_rows, ix, xo):
    """How many logical (t,b) rows to fold into one kernel row.

    pack=4 -> 256-wide lanes (native v6e/v7x MXU tile), pack=2 -> 128-wide
    (v5e MXU / vreg lane width).  Anything below 128 lanes triggers masked
    partial stores -- the single biggest observed perf lever.
    """
    for p in (4, 2):
        if n_rows % p == 0 and p * ix <= 256 and p * xo <= 256:
            return p
    return 1


def _choose_row_tile(rows):
    """Packed rows per grid step (multiple of 8, or the full extent)."""
    if rows <= 1024:
        return rows                      # single resident block (always legal)
    limit = min(rows // 2, 4096)
    best = 0
    bm = 8
    while bm <= limit:                   # prefer exact divisors -> no ragged edge
        if rows % bm == 0:
            best = bm
        bm += 8
    if best:
        return best                      # >= 2 programs (v7x megacore), few-MiB tiles
    if rows <= 4096:
        return rows                      # full extent still fits VMEM comfortably
    return 4096                          # ragged final block masked by Pallas


def pack_block_diag_weights(weights1, pack):
    """W_packed[r*I*X + i*X + m', r*X*O + m*O + o] = W[m,i,o] * (m'==m)."""
    X, I, O = weights1.shape
    eye_x = jnp.eye(X, dtype=weights1.dtype)
    w_base = jnp.einsum("mio,nm->inmo", weights1, eye_x).reshape(I * X, X * O)
    if pack == 1:
        return w_base
    eye_p = jnp.eye(pack, dtype=weights1.dtype)
    return jnp.einsum("kn,rs->rksn", w_base, eye_p).reshape(
        pack * I * X, pack * X * O
    )


def make_spatial_approximation_block(weights1):
    """Precompute the packed weight once per weight update; returns forward(x)."""
    X, I, O = weights1.shape
    packed_cache = {}

    def forward(x, permute_output=True):
        T, B, Ix, Xx = x.shape
        assert (Ix, Xx) == (I, X), "x channel/mode dims must match weights1"
        TB = T * B

        pack = _choose_pack(TB, I * X, X * O)
        K, N = pack * I * X, pack * X * O

        # TODO(synk): for large modes1 the dense block-diagonal weight grows as
        # X^2*I*O; tile the mode axis (extra grid dim) instead of densifying.
        assert K * N * 4 <= 8 * 1024 * 1024, (
            "block-diagonal weight too large for a single VMEM-resident tile"
        )

        if pack not in packed_cache:
            packed_cache[pack] = pack_block_diag_weights(weights1, pack)
        w_packed = packed_cache[pack]

        rows = TB // pack
        # Contiguous (zero-copy) reshape: column index = r*I*X + i*X + m.
        x_packed = x.reshape(rows, K)

        bm = _choose_row_tile(rows)
        grid = (pl.cdiv(rows, bm),)

        out_packed = pl.pallas_call(
            _spatial_matmul_kernel,
            out_shape=jax.ShapeDtypeStruct((rows, N), x.dtype),
            grid=grid,
            in_specs=[
                pl.BlockSpec((bm, K), lambda r: (r, 0)),
                pl.BlockSpec((K, N), lambda r: (0, 0)),   # grid-invariant weight
            ],
            out_specs=pl.BlockSpec((bm, N), lambda r: (r, 0)),
            compiler_params=pltpu.CompilerParams(
                dimension_semantics=("parallel",),
            ),
        )(x_packed, w_packed)

        # (rows, pack*X*O) -> (T, B, X, O): contiguous, free.
        out = out_packed.reshape(T, B, X, O)
        if permute_output:
            # Module semantics require (T, X, B, O).  If the consumer accepts
            # (T, B, X, O), pass permute_output=False to skip this relayout.
            out = jnp.transpose(out, (0, 2, 1, 3))
        return out

    return forward


def spatial_approximation_block(x, weights1, permute_output=True):
    """One-shot convenience wrapper matching the PyTorch module's forward."""
    return make_spatial_approximation_block(weights1)(x, permute_output)


if __name__ == "__main__":
    # Small, deterministic shapes consistent with the module:
    T, B = 8, 2                 # time steps, batch
    in_channels = 4
    out_channels = 4
    modes1 = 16                 # number of spatial (LBO) modes -> last dim of x

    key = jax.random.PRNGKey(0)
    kx, kw = jax.random.split(key)

    # deterministic parameter init mirroring: scale * torch.rand(modes1, in, out)
    scale = 1.0 / (in_channels * out_channels)
    weights1 = scale * jax.random.uniform(
        kw, (modes1, in_channels, out_channels), dtype=jnp.float32
    )

    # input x: (T, B, in_channels, modes1)
    x = jax.random.normal(kx, (T, B, in_channels, modes1), dtype=jnp.float32)

    forward = make_spatial_approximation_block(weights1)
    out = forward(x)
    out = jax.block_until_ready(out)

    # silent correctness check against the pure-JAX reference of the einsum
    ref = jnp.einsum(
        "txbi,xio->txbo", jnp.transpose(x, (0, 3, 1, 2)), weights1
    )
    assert out.shape == (T, modes1, B, out_channels)
    assert jnp.allclose(out, ref, atol=1e-5, rtol=1e-5)

    print("KERNEL_OK")
</pallas_src>

<mosaic_0001>
module attributes {stable_mosaic.version = 11 : i64} {
  func.func @_spatial_matmul_kernel(%arg0: i32, %arg1: memref<4x256xf32, #tpu.memory_space<vmem>>, %arg2: memref<256x256xf32, #tpu.memory_space<vmem>>, %arg3: memref<4x256xf32, #tpu.memory_space<vmem>>) attributes {dimension_semantics = [#tpu.dimension_semantics<parallel>], iteration_bounds = array<i64: 1>, scalar_prefetch = 0 : i64, scratch_operands = 0 : i64, tpu.core_type = #tpu.core_type<tc>, window_params = [{transform_indices = @transform_0, window_bounds = array<i64: 4, 256>}, {pipeline_mode = #tpu.pipeline_mode<synchronous>, transform_indices = @transform_1, window_bounds = array<i64: 256, 256>}, {transform_indices = @transform_2, window_bounds = array<i64: 4, 256>}]} {
    %c0 = arith.constant 0 : index
    %c0_0 = arith.constant 0 : index
    %0 = vector.load %arg1[%c0, %c0_0] : memref<4x256xf32, #tpu.memory_space<vmem>>, vector<4x256xf32>
    %c0_1 = arith.constant 0 : index
    %c0_2 = arith.constant 0 : index
    %1 = vector.load %arg2[%c0_1, %c0_2] : memref<256x256xf32, #tpu.memory_space<vmem>>, vector<256x256xf32>
    %cst = arith.constant dense<0.000000e+00> : vector<4x256xf32>
    %2 = tpu.matmul %0, %1, %cst {dimension_numbers = #tpu.dot_dimension_numbers<[1], [0], [0], [1], [0, 0, 1, 1], [], []>} : vector<4x256xf32>, vector<256x256xf32>, vector<4x256xf32> -> vector<4x256xf32>
    %c0_3 = arith.constant 0 : index
    %c0_4 = arith.constant 0 : index
    %3 = vector.load %arg3[%c0_3, %c0_4] : memref<4x256xf32, #tpu.memory_space<vmem>>, vector<4x256xf32>
    tpu.vector_store %arg3[%c0_3, %c0_4], %2 {strides = array<i32>} : memref<4x256xf32, #tpu.memory_space<vmem>>, vector<4x256xf32>,
    return
  }
  func.func @transform_0(%arg0: i32) -> (i32, i32) {
    %c0_i32 = arith.constant 0 : i32
    %c0_i32_0 = arith.constant 0 : i32
    return %arg0, %c0_i32 : i32, i32
  }
  func.func @transform_1(%arg0: i32) -> (i32, i32) {
    %c0_i32 = arith.constant 0 : i32
    %c0_i32_0 = arith.constant 0 : i32
    %c0_i32_1 = arith.constant 0 : i32
    return %c0_i32, %c0_i32_0 : i32, i32
  }
  func.func @transform_2(%arg0: i32) -> (i32, i32) {
    %c0_i32 = arith.constant 0 : i32
    %c0_i32_0 = arith.constant 0 : i32
    return %arg0, %c0_i32 : i32, i32
  }
}

</mosaic_0001>

<llo_original>
// kernel: tpu_custom_call.1
$region0: #{tpu_custom_call.1}
  #allocation0 [shape = 'u32[]', space=smem, size = 0x4, offset = 0x4, fixed_abs, tag = 'smem constant byte address 0x4 - core index']
  #allocation1 [shape = 'u32[72,128]{1,0:T(1,128)}', space=vmem, size = 0x9000, scoped, tag = 'internal scratch']
  %s0 = inlined_call_operand.hbm [shape: f32[4,256], index: 0, kind: input, shape index: {}]
  %s1 = inlined_call_operand.hbm [shape: f32[256,256], index: 1, kind: input, shape index: {}]
  %s2 = inlined_call_operand.hbm [shape: f32[4,256], index: 2, kind: output, shape index: {}]
  %s3 = sld [smem:[#allocation0]]
  $region26: #{tpu_custom_call.1} parent=0
    _
  %s5 = ssub.s32 1, %s3
  %s6 = scalar_select 0, %s5, %s3
  $region1: #{tpu_custom_call.1} parent=0
    #allocation2 [shape = 'u8[4096]{0}', space=vmem, size = 0x1000, scoped, tag = 'input window, operand 0, single buffered']
    #allocation3 [shape = 's32[1]{0}', space=sflag, size = 0x4, scoped, tag = 'scoped memory for tpu_custom_call.1']
    #allocation4 [shape = 's32[1]{0}', space=sflag, size = 0x4, scoped, tag = 'scoped memory for tpu_custom_call.1']
    #allocation5 [shape = 'u8[262144]{0}', space=vmem, size = 0x40000, scoped, tag = 'input window, operand 1, single buffered']
    #allocation6 [shape = 's32[1]{0}', space=sflag, size = 0x4, scoped, tag = 'scoped memory for tpu_custom_call.1']
    #allocation7 [shape = 'u8[4096]{0}', space=vmem, size = 0x1000, scoped, tag = 'output window, operand 0, single buffered']
    %7 = vsyncpa [#allocation3], 0
    %8 = vsyncpa [#allocation6], 0
    %9 = vsyncpa [#allocation4], 0
    // Predicated region
    $region2: #{tpu_custom_call.1} parent=1 // pred_check
      _
    $region3: #{tpu_custom_call.1} parent=1 // pred_check_branch
      %11 = sbr.rel (0) target = $region5
    $region4: #{tpu_custom_call.1} parent=1 // pred_region
      %13 = vsyncadd [#allocation3], 0
      %s15 = sshll.u32 %s0, 4
      %s16 = int_to_ptr.hbm [resolvable:$true] %s15
      %s17 = sshll.u32 [#allocation2], 4
      %s18 = int_to_ptr.vmem [resolvable:$true] %s17
      %20 = dma.hbm_to_vmem [thread:$0]  %s16, 128, %s18, [#allocation3]
    $region5: #{tpu_custom_call.1} parent=1 // pred_fallthru
      _
    // Predicated region
    $region6: #{tpu_custom_call.1} parent=1 // pred_check
      _
    $region7: #{tpu_custom_call.1} parent=1 // pred_check_branch
      %22 = sbr.rel (0) target = $region9
    $region8: #{tpu_custom_call.1} parent=1 // pred_region
      %24 = vsyncadd [#allocation6], 0
      %s25 = sshll.u32 %s1, 4
      %s26 = int_to_ptr.hbm [resolvable:$true] %s25
      %s27 = sshll.u32 [#allocation5], 4
      %s28 = int_to_ptr.vmem [resolvable:$true] %s27
      %33 = dma.hbm_to_vmem [thread:$0]  %s26, 8192, %s28, [#allocation6], 256, 256, 16
    $region9: #{tpu_custom_call.1} parent=1 // pred_fallthru
      _
    // Predicated region
    $region10: #{tpu_custom_call.1} parent=1 // pred_check
      _
    $region11: #{tpu_custom_call.1} parent=1 // pred_check_branch
      %35 = sbr.rel (0) target = $region13
    $region12: #{tpu_custom_call.1} parent=1 // pred_region
      %37 = dma.done [#allocation3], 128
    $region13: #{tpu_custom_call.1} parent=1 // pred_fallthru
      _
    // Predicated region
    $region14: #{tpu_custom_call.1} parent=1 // pred_check
      _
    $region15: #{tpu_custom_call.1} parent=1 // pred_check_branch
      %39 = sbr.rel (0) target = $region17
    $region16: #{tpu_custom_call.1} parent=1 // pred_region
      %41 = dma.done [#allocation6], 8192
    $region17: #{tpu_custom_call.1} parent=1 // pred_fallthru
      _
    %v42 = vld [vmem:[#allocation2] sm:$0xff]
    %v43 = vld [vmem:[#allocation5] sm:$0xff]
    %v44 = vld [vmem:[#allocation5 + $0x8] sm:$0xff]
    %v45 = vld [vmem:[#allocation5 + $0x10] sm:$0xff]
    %v46 = vld [vmem:[#allocation5 + $0x18] sm:$0xff]
    %v47 = vld [vmem:[#allocation5 + $0x20] sm:$0xff]
    %v48 = vld [vmem:[#allocation5 + $0x28] sm:$0xff]
    %v49 = vld [vmem:[#allocation5 + $0x30] sm:$0xff]
    %v50 = vld [vmem:[#allocation5 + $0x38] sm:$0xff]
    %v51 = vld [vmem:[#allocation5 + $0x40] sm:$0xff]
    %v52 = vld [vmem:[#allocation5 + $0x48] sm:$0xff]
    %v53 = vld [vmem:[#allocation5 + $0x50] sm:$0xff]
    %v54 = vld [vmem:[#allocation5 + $0x58] sm:$0xff]
    %v55 = vld [vmem:[#allocation5 + $0x60] sm:$0xff]
    %v56 = vld [vmem:[#allocation5 + $0x68] sm:$0xff]
    %v57 = vld [vmem:[#allocation5 + $0x70] sm:$0xff]
    %v58 = vld [vmem:[#allocation5 + $0x78] sm:$0xff]
    %v59 = vld [vmem:[#allocation5 + $0x80] sm:$0xff]
    %v60 = vld [vmem:[#allocation5 + $0x88] sm:$0xff]
    %v61 = vld [vmem:[#allocation5 + $0x90] sm:$0xff]
    %v62 = vld [vmem:[#allocation5 + $0x98] sm:$0xff]
    %v63 = vld [vmem:[#allocation5 + $0xa0] sm:$0xff]
    %v64 = vld [vmem:[#allocation5 + $0xa8] sm:$0xff]
    %v65 = vld [vmem:[#allocation5 + $0xb0] sm:$0xff]
    %v66 = vld [vmem:[#allocation5 + $0xb8] sm:$0xff]
    %v67 = vld [vmem:[#allocation5 + $0xc0] sm:$0xff]
    %v68 = vld [vmem:[#allocation5 + $0xc8] sm:$0xff]
    %v69 = vld [vmem:[#allocation5 + $0xd0] sm:$0xff]
    %v70 = vld [vmem:[#allocation5 + $0xd8] sm:$0xff]
    %v71 = vld [vmem:[#allocation5 + $0xe0] sm:$0xff]
    %v72 = vld [vmem:[#allocation5 + $0xe8] sm:$0xff]
    %v73 = vld [vmem:[#allocation5 + $0xf0] sm:$0xff]
    %v74 = vld [vmem:[#allocation5 + $0xf8] sm:$0xff]
    %v75 = vld [vmem:[#allocation5 + $0x100] sm:$0xff]
    %v76 = vld [vmem:[#allocation5 + $0x108] sm:$0xff]
    %v77 = vld [vmem:[#allocation5 + $0x110] sm:$0xff]
    %v78 = vld [vmem:[#allocation5 + $0x118] sm:$0xff]
    %v79 = vld [vmem:[#allocation5 + $0x120] sm:$0xff]
    %v80 = vld [vmem:[#allocation5 + $0x128] sm:$0xff]
    %v81 = vld [vmem:[#allocation5 + $0x130] sm:$0xff]
    %v82 = vld [vmem:[#allocation5 + $0x138] sm:$0xff]
    %v83 = vld [vmem:[#allocation5 + $0x140] sm:$0xff]
    %v84 = vld [vmem:[#allocation5 + $0x148] sm:$0xff]
    %v85 = vld [vmem:[#allocation5 + $0x150] sm:$0xff]
    %v86 = vld [vmem:[#allocation5 + $0x158] sm:$0xff]
    %v87 = vld [vmem:[#allocation5 + $0x160] sm:$0xff]
    %v88 = vld [vmem:[#allocation5 + $0x168] sm:$0xff]
    %v89 = vld [vmem:[#allocation5 + $0x170] sm:$0xff]
    %v90 = vld [vmem:[#allocation5 + $0x178] sm:$0xff]
    %v91 = vld [vmem:[#allocation5 + $0x180] sm:$0xff]
    %v92 = vld [vmem:[#allocation5 + $0x188] sm:$0xff]
    %v93 = vld [vmem:[#allocation5 + $0x190] sm:$0xff]
    %v94 = vld [vmem:[#allocation5 + $0x198] sm:$0xff]
    %v95 = vld [vmem:[#allocation5 + $0x1a0] sm:$0xff]
    %v96 = vld [vmem:[#allocation5 + $0x1a8] sm:$0xff]
    %v97 = vld [vmem:[#allocation5 + $0x1b0] sm:$0xff]
    %v98 = vld [vmem:[#allocation5 + $0x1b8] sm:$0xff]
    %v99 = vld [vmem:[#allocation5 + $0x1c0] sm:$0xff]
    %v100 = vld [vmem:[#allocation5 + $0x1c8] sm:$0xff]
    %v101 = vld [vmem:[#allocation5 + $0x1d0] sm:$0xff]
    %v102 = vld [vmem:[#allocation5 + $0x1d8] sm:$0xff]
    %v103 = vld [vmem:[#allocation5 + $0x1e0] sm:$0xff]
    %v104 = vld [vmem:[#allocation5 + $0x1e8] sm:$0xff]
    %v105 = vld [vmem:[#allocation5 + $0x1f0] sm:$0xff]
    %v106 = vld [vmem:[#allocation5 + $0x1f8] sm:$0xff]
    %108 = vst [vmem:[#allocation1] ss:$2 sm:$0xff] %v42
    %v109 = vld.sshfl [vmem:[#allocation1] sm:$0xff pattern:$0x75316420]
    %v110 = vld.sshfl [vmem:[#allocation1 + $0x8] sm:$0xff pattern:$0x75316420]
    %113 = vmatpush.msra.mxu0 %v73
    %114 = vmatpush.msra.mxu0 %v71
    %115 = vmatpush.msra.mxu0 %v69
    %116 = vmatpush.msra.mxu0 %v67
    %117 = vmatpush.msra.mxu0 %v65
    %118 = vmatpush.msra.mxu0 %v63
    %119 = vmatpush.msra.mxu0 %v61
    %120 = vmatpush.msra.mxu0 %v59
    %121 = vmatpush.msra.mxu0 %v57
    %122 = vmatpush.msra.mxu0 %v55
    %123 = vmatpush.msra.mxu0 %v53
    %124 = vmatpush.msra.mxu0 %v51
    %125 = vmatpush.msra.mxu0 %v49
    %126 = vmatpush.msra.mxu0 %v47
    %127 = vmatpush.msra.mxu0 %v45
    %128 = vmatpush.msra.mxu0 %v43
    %129 = vmatmul.f32.gmra.mxu0 %v109
    %v130 = vpop.f32.mrf.mxu0
    %v131 = vadd.f32 0.0, %v130
    %132 = vdwg.mxu0
    %133 = vmatpush.msra.mxu0 %v105
    %134 = vmatpush.msra.mxu0 %v103
    %135 = vmatpush.msra.mxu0 %v101
    %136 = vmatpush.msra.mxu0 %v99
    %137 = vmatpush.msra.mxu0 %v97
    %138 = vmatpush.msra.mxu0 %v95
    %139 = vmatpush.msra.mxu0 %v93
    %140 = vmatpush.msra.mxu0 %v91
    %141 = vmatpush.msra.mxu0 %v89
    %142 = vmatpush.msra.mxu0 %v87
    %143 = vmatpush.msra.mxu0 %v85
    %144 = vmatpush.msra.mxu0 %v83
    %145 = vmatpush.msra.mxu0 %v81
    %146 = vmatpush.msra.mxu0 %v79
    %147 = vmatpush.msra.mxu0 %v77
    %148 = vmatpush.msra.mxu0 %v75
    %149 = vmatmul.f32.gmra.mxu0 %v110
    %v150 = vpop.f32.mrf.mxu0
    %v151 = vadd.f32 %v131, %v150
    %152 = vdwg.mxu0
    %153 = vmatpush.msra.mxu0 %v74
    %154 = vmatpush.msra.mxu0 %v72
    %155 = vmatpush.msra.mxu0 %v70
    %156 = vmatpush.msra.mxu0 %v68
    %157 = vmatpush.msra.mxu0 %v66
    %158 = vmatpush.msra.mxu0 %v64
    %159 = vmatpush.msra.mxu0 %v62
    %160 = vmatpush.msra.mxu0 %v60
    %161 = vmatpush.msra.mxu0 %v58
    %162 = vmatpush.msra.mxu0 %v56
    %163 = vmatpush.msra.mxu0 %v54
    %164 = vmatpush.msra.mxu0 %v52
    %165 = vmatpush.msra.mxu0 %v50
    %166 = vmatpush.msra.mxu0 %v48
    %167 = vmatpush.msra.mxu0 %v46
    %168 = vmatpush.msra.mxu0 %v44
    %169 = vmatmul.f32.gmra.mxu0 %v109
    %v170 = vpop.f32.mrf.mxu0
    %v171 = vadd.f32 0.0, %v170
    %172 = vdwg.mxu0
    %173 = vmatpush.msra.mxu0 %v106
    %174 = vmatpush.msra.mxu0 %v104
    %175 = vmatpush.msra.mxu0 %v102
    %176 = vmatpush.msra.mxu0 %v100
    %177 = vmatpush.msra.mxu0 %v98
    %178 = vmatpush.msra.mxu0 %v96
    %179 = vmatpush.msra.mxu0 %v94
    %180 = vmatpush.msra.mxu0 %v92
    %181 = vmatpush.msra.mxu0 %v90
    %182 = vmatpush.msra.mxu0 %v88
    %183 = vmatpush.msra.mxu0 %v86
    %184 = vmatpush.msra.mxu0 %v84
    %185 = vmatpush.msra.mxu0 %v82
    %186 = vmatpush.msra.mxu0 %v80
    %187 = vmatpush.msra.mxu0 %v78
    %188 = vmatpush.msra.mxu0 %v76
    %189 = vmatmul.f32.gmra.mxu0 %v110
    %v190 = vpop.f32.mrf.mxu0
    %v191 = vadd.f32 %v171, %v190
    %192 = vdwg.mxu0
    %v195 = vrot.slane %v191, 4
    %vm196 = vcmask 1043456
    %v197 = vsel %vm196, %v151, %v195
    %199 = vst [vmem:[#allocation7] sm:$0xff] %v197
    // Predicated region
    $region18: #{tpu_custom_call.1} parent=1 // pred_check
      _
    $region19: #{tpu_custom_call.1} parent=1 // pred_check_branch
      %201 = sbr.rel (0) target = $region21
    $region20: #{tpu_custom_call.1} parent=1 // pred_region
      %203 = vsyncadd [#allocation4], 0
      %s205 = sshll.u32 [#allocation7], 4
      %s206 = int_to_ptr.vmem [resolvable:$true] %s205
      %s207 = sshll.u32 %s2, 4
      %s208 = int_to_ptr.hbm [resolvable:$true] %s207
      %210 = dma.vmem_to_hbm [thread:$0]  %s206, 128, %s208, [#allocation4]
    $region21: #{tpu_custom_call.1} parent=1 // pred_fallthru
      _
    // Predicated region
    $region22: #{tpu_custom_call.1} parent=1 // pred_check
      _
    $region23: #{tpu_custom_call.1} parent=1 // pred_check_branch
      %212 = sbr.rel (0) target = $region25
    $region24: #{tpu_custom_call.1} parent=1 // pred_region
      %214 = dma.done [#allocation4], 128
    $region25: #{tpu_custom_call.1} parent=1 // pred_fallthru
      _
    %215 = vsyncpa [#allocation3], 1
    %216 = vsyncpa [#allocation6], 1
    %217 = vsyncpa [#allocation4], 1

</llo_original>
